<compile_context>
chip_gen: v5e
topology: v5e:2x2
jax: 0.10.0
libtpu: 0.0.40
codegen_flags: <defaults>
</compile_context>

<pallas_src>
import jax
import jax.numpy as jnp
from jax.experimental import pallas as pl
from jax.experimental.pallas import tpu as pltpu


_SUBLANE_MULT = {4: 8, 2: 16, 1: 32}          # f32 / bf16 / int8-fp8 sublane packing
_TARGET_BLOCK_BYTES = 2 * 1024 * 1024         # ~2 MiB/block; 2x(in+out) bufs ~ 8 MiB VMEM


def _sparse_kernel(k_ref, x_ref, o_ref):
    # k_ref: SMEM scalar prefetch (f32). x_ref / o_ref: VMEM tiles in input dtype.
    k = k_ref[0]
    x = x_ref[...]
    # Compare in f32 for parity with the torch fp32 threshold; select in input dtype.
    drop = jnp.abs(x).astype(jnp.float32) < k
    o_ref[...] = jnp.where(drop, jnp.zeros_like(x), x)


def _plan_tiling(total, itemsize):
    """Pick a lane-dense [rows, lanes] view and a VMEM tile for the flat tensor."""
    sub = _SUBLANE_MULT.get(itemsize, 8)
    lanes = None
    for cand in (2048, 1024, 512, 256, 128):
        if total % cand == 0:
            lanes = cand
            break
    if lanes is None:
        lanes = 1024  # pad the flat tensor up to a multiple of this
    padded = -(-total // lanes) * lanes
    rows = padded // lanes
    target_rows = max(sub, _TARGET_BLOCK_BYTES // (itemsize * lanes))
    if target_rows >= rows:
        tile_rows = rows  # full row dim as one block (legal even if not a sublane multiple)
    else:
        tile_rows = max(sub, (target_rows // sub) * sub)  # dtype-aware sublane multiple
    return padded, rows, lanes, tile_rows


@jax.jit
def _sparse_threshold_jit(x, k_f32):
    orig_shape = x.shape
    total = x.size
    itemsize = jnp.dtype(x.dtype).itemsize
    padded, rows, lanes, tile_rows = _plan_tiling(total, itemsize)

    flat = x.reshape(-1)
    if padded != total:
        flat = jnp.pad(flat, (0, padded - total))
    x2d = flat.reshape(rows, lanes)

    grid = (pl.cdiv(rows, tile_rows),)
    k_arr = k_f32.astype(jnp.float32).reshape(1)

    out2d = pl.pallas_call(
        _sparse_kernel,
        out_shape=jax.ShapeDtypeStruct((rows, lanes), x2d.dtype),
        grid_spec=pltpu.PrefetchScalarGridSpec(
            num_scalar_prefetch=1,
            grid=grid,
            in_specs=[pl.BlockSpec((tile_rows, lanes), lambda i, k_ref: (i, 0))],
            out_specs=pl.BlockSpec((tile_rows, lanes), lambda i, k_ref: (i, 0)),
        ),
        compiler_params=pltpu.CompilerParams(
            dimension_semantics=("parallel",),
        ),
    )(k_arr, x2d)

    out_flat = out2d.reshape(-1)
    if padded != total:
        out_flat = out_flat[:total]
    return out_flat.reshape(orig_shape)


def sparse_threshold(x: jax.Array, k: float) -> jax.Array:
    """Elementwise: where(|x| < k, 0, x), computed in a Pallas TPU kernel."""
    return _sparse_threshold_jit(x, jnp.asarray(k, dtype=jnp.float32))


class Sparse:
    """JAX/Pallas port of the PyTorch Sparse module (stateful last_k)."""

    def __init__(self):
        self.last_k = 0.0

    def get_k(self, epoch, l0_norm):
        l0_norm_threshold = 40
        start = 250
        maximum = 0.1
        end = 500
        minimum = 0
        if l0_norm <= l0_norm_threshold:
            return self.last_k
        if epoch < start:
            return minimum
        elif epoch > end:
            return maximum
        else:
            return (epoch - start) * (maximum / (end - start))

    def __call__(self, X, epoch, l0_norm):
        self.last_k = float(self.get_k(epoch, l0_norm))
        return sparse_threshold(X, self.last_k)


if __name__ == "__main__":
    key = jax.random.PRNGKey(0)
    # Small NCHW input consistent with typical activations fed to this module.
    X = jax.random.normal(key, (2, 4, 16, 16), dtype=jnp.float32) * 0.1

    module = Sparse()

    # Exercise the scalar schedule: epoch in the ramp region, l0_norm above
    # the threshold so k = (epoch - 250) * (0.1 / 250).
    epoch, l0_norm = 375, 100
    out = jax.block_until_ready(module(X, epoch, l0_norm))

    k = module.last_k
    ref = jnp.where(jnp.abs(X) < k, 0.0, X)
    assert out.shape == X.shape and out.dtype == X.dtype
    assert jnp.array_equal(out, ref), "mismatch vs reference"

    # Stateful branch (l0_norm <= 40 keeps last_k).
    out2 = jax.block_until_ready(module(X, 10, 5))
    assert module.last_k == k
    assert jnp.array_equal(out2, ref)

    # Odd shape (not a multiple of 128) exercises the padded tiling path.
    X3 = jax.random.normal(jax.random.PRNGKey(1), (2, 3, 17, 19), dtype=jnp.float32) * 0.1
    out3 = jax.block_until_ready(module(X3, 600, 100))  # epoch > end -> k = 0.1
    ref3 = jnp.where(jnp.abs(X3) < module.last_k, 0.0, X3)
    assert out3.shape == X3.shape and jnp.array_equal(out3, ref3)

    print("KERNEL_OK")
</pallas_src>

<mosaic_0001>
module attributes {stable_mosaic.version = 11 : i64} {
  func.func @_sparse_kernel(%arg0: i32, %arg1: memref<1xf32, #tpu.memory_space<smem>>, %arg2: memref<1x2048xf32, #tpu.memory_space<vmem>>, %arg3: memref<1x2048xf32, #tpu.memory_space<vmem>>) attributes {dimension_semantics = [#tpu.dimension_semantics<parallel>], iteration_bounds = array<i64: 1>, scalar_prefetch = 1 : i64, scratch_operands = 0 : i64, tpu.core_type = #tpu.core_type<tc>, window_params = [{transform_indices = @transform_0, window_bounds = array<i64: 1, 2048>}, {transform_indices = @transform_1, window_bounds = array<i64: 1, 2048>}]} {
    %c0 = arith.constant 0 : index
    %0 = memref.load %arg1[%c0] : memref<1xf32, #tpu.memory_space<smem>>
    %c0_0 = arith.constant 0 : index
    %c0_1 = arith.constant 0 : index
    %1 = vector.load %arg2[%c0_0, %c0_1] : memref<1x2048xf32, #tpu.memory_space<vmem>>, vector<1x2048xf32>
    %2 = math.absf %1 : vector<1x2048xf32>
    %3 = vector.broadcast %0 : f32 to vector<1x2048xf32>
    %4 = arith.cmpf olt, %2, %3 : vector<1x2048xf32>
    %cst = arith.constant 0.000000e+00 : f32
    %5 = vector.broadcast %cst : f32 to vector<1x2048xf32>
    %6 = arith.select %4, %5, %1 : vector<1x2048xi1>, vector<1x2048xf32>
    %c0_2 = arith.constant 0 : index
    %c0_3 = arith.constant 0 : index
    %7 = vector.load %arg3[%c0_2, %c0_3] : memref<1x2048xf32, #tpu.memory_space<vmem>>, vector<1x2048xf32>
    tpu.vector_store %arg3[%c0_2, %c0_3], %6 {strides = array<i32>} : memref<1x2048xf32, #tpu.memory_space<vmem>>, vector<1x2048xf32>,
    return
  }
  func.func @transform_0(%arg0: i32, %arg1: memref<1xf32, #tpu.memory_space<smem>>) -> (i32, i32) {
    %c0_i32 = arith.constant 0 : i32
    %c0_i32_0 = arith.constant 0 : i32
    return %arg0, %c0_i32 : i32, i32
  }
  func.func @transform_1(%arg0: i32, %arg1: memref<1xf32, #tpu.memory_space<smem>>) -> (i32, i32) {
    %c0_i32 = arith.constant 0 : i32
    %c0_i32_0 = arith.constant 0 : i32
    return %arg0, %c0_i32 : i32, i32
  }
}

</mosaic_0001>

<llo_original>
// kernel: _sparse_threshold_jit.1
$region0: #{_sparse_threshold_jit.1}
  #allocation0 [shape = 'u32[]', space=smem, size = 0x4, offset = 0x4, fixed_abs, tag = 'smem constant byte address 0x4 - core index']
  #allocation1 [shape = 'u32[72,128]{1,0:T(1,128)}', space=vmem, size = 0x9000, scoped, tag = 'internal scratch']
  #allocation2 [shape = 's32[1]{0}', space=sflag, size = 0x4, scoped, tag = 'scoped memory for _sparse_threshold_jit.1']
  #allocation3 [shape = 'f32[1]{0:T(128)S(6)}', space=smem, size = 0x200, scoped, tag = 'prefetched SMEM operand 0']
  %s0 = inlined_call_operand.<no memory space> [shape: f32[1], index: 0, kind: input, shape index: {}]
  %s1 = inlined_call_operand.vmem [shape: f32[1,2048], index: 1, kind: input, shape index: {}]
  %s2 = inlined_call_operand.vmem [shape: f32[1,2048], index: 2, kind: output, shape index: {}]
  %s3 = sld [smem:[#allocation0]]
  $region14: #{_sparse_threshold_jit.1} parent=0
    _
  %s5 = ssub.s32 1, %s3
  %s6 = scalar_select 0, %s5, %s3
  %7 = sst [smem:[#allocation3]] %s0
  // Predicated region
  $region2: #{_sparse_threshold_jit.1} parent=0 // pred_check
    _
  $region3: #{_sparse_threshold_jit.1} parent=0 // pred_check_branch
    %9 = sbr.rel (0) target = $region5
  $region4: #{_sparse_threshold_jit.1} parent=0 // pred_region
    _
  $region5: #{_sparse_threshold_jit.1} parent=0 // pred_fallthru
    _
  %s10 = sld [smem:[#allocation3]]
  %v11 = vld [vmem:[%s1] sm:$0xff]
  %v12 = vld [vmem:[%s1 + $0x8] sm:$0xff]
  %v13 = vand.u32 2147483647, %v11
  %v14 = vand.u32 2147483647, %v12
  %v15 = vstv %s10
  %vm16 = vcmp.lt.f32.partialorder %v13, %v15
  %vm17 = vcmp.lt.f32.partialorder %v14, %v15
  %v18 = vsel %vm16, 0.0, %v11
  %v19 = vsel %vm17, 0.0, %v12
  %20 = vst [vmem:[%s2] sm:$0xff] %v18
  %21 = vst [vmem:[%s2 + $0x8] sm:$0xff] %v19
  // Predicated region
  $region6: #{_sparse_threshold_jit.1} parent=0 // pred_check
    _
  $region7: #{_sparse_threshold_jit.1} parent=0 // pred_check_branch
    %23 = sbr.rel (0) target = $region9
  $region8: #{_sparse_threshold_jit.1} parent=0 // pred_region
    _
  $region9: #{_sparse_threshold_jit.1} parent=0 // pred_fallthru
    _
  // Predicated region
  $region10: #{_sparse_threshold_jit.1} parent=0 // pred_check
    _
  $region11: #{_sparse_threshold_jit.1} parent=0 // pred_check_branch
    %25 = sbr.rel (0) target = $region13
  $region12: #{_sparse_threshold_jit.1} parent=0 // pred_region
    _
  $region13: #{_sparse_threshold_jit.1} parent=0 // pred_fallthru
    _

</llo_original>
